<compile_context>
chip_gen: v6e
topology: v6e:2x2x1
jax: 0.10.0
libtpu: 0.0.40
codegen_flags: <defaults>
</compile_context>

<pallas_src>
import functools

import jax
import jax.numpy as jnp
from jax.experimental import pallas as pl
from jax.experimental.pallas import tpu as pltpu

_NEG_BIG = -1e30


def _asoftmax_loss_kernel(tgt_ref, cos_ref, phi_tgt_ref, loss_ref, *,
                          scale, gamma, b_true, tb):
    cos = cos_ref[...].astype(jnp.float32)          # [TB, Cpad]
    tgt = tgt_ref[...]                              # [TB, 1] int32
    phi_t = phi_tgt_ref[...].astype(jnp.float32)    # [TB, 1]

    TB, C = cos.shape
    col = jax.lax.broadcasted_iota(jnp.int32, (TB, C), 1)
    onehot = col == tgt                             # [TB, Cpad]

    # cos at the target column per row (single cross-lane reduce).
    cos_t = jnp.sum(jnp.where(onehot, cos, 0.0), axis=1, keepdims=True)   # [TB, 1]
    # Annealed-margin blend at the target position (matches the PyTorch formula).
    out_t = cos_t - cos_t * scale + phi_t * scale                          # [TB, 1]

    # Logits: cos everywhere, blended value at the target column.
    output = jnp.where(onehot, out_t, cos)                                 # [TB, Cpad]

    # Stable log-sum-exp along classes; gathered log-prob without a log_sm tile.
    m = jnp.max(output, axis=1, keepdims=True)
    lse = jnp.log(jnp.sum(jnp.exp(output - m), axis=1, keepdims=True))
    logit = out_t - m - lse                                                # [TB, 1]

    if gamma == 0:
        loss_vec = -logit
    elif isinstance(gamma, int) and gamma > 0:
        pt = jnp.exp(logit)
        w = 1.0 - pt
        mod = w
        for _ in range(gamma - 1):          # unrolled VPU multiply chain (no pow)
            mod = mod * w
        loss_vec = -mod * logit
    else:
        pt = jnp.exp(logit)
        loss_vec = -((1.0 - pt) ** gamma) * logit

    # Mask rows that are batch padding; mean over the true B happens in the wrapper.
    row = pl.program_id(0) * tb + jax.lax.broadcasted_iota(jnp.int32, (TB, 1), 0)
    loss_vec = jnp.where(row < b_true, loss_vec, 0.0)

    loss_ref[0, 0] = jnp.sum(loss_vec)      # per-tile partial sum -> SMEM scalar


def _round_up(x, m):
    return (x + m - 1) // m * m


def angular_softmax_with_loss(cos_theta, phi_theta, target, *, gamma=0, it=1,
                              lambda_min=5.0, lambda_max=1500.0):
    """JAX/Pallas equivalent of AngularSoftmaxWithLoss.forward at iteration `it`."""
    B, C = cos_theta.shape
    lamb = max(lambda_min, lambda_max / (1.0 + 0.1 * it))
    scale = 1.0 / (1.0 + lamb)

    C_pad = _round_up(C, 128)
    itemsize = jnp.dtype(cos_theta.dtype).itemsize
    # Keep the double-buffered cos tile under ~12 MiB; rows a multiple of 8.
    tb = (12 * 1024 * 1024) // (2 * C_pad * itemsize)
    tb = max(8, min(1024, (tb // 8) * 8))
    tb = min(tb, _round_up(B, 8))
    B_pad = _round_up(B, tb)
    grid = B_pad // tb

    tgt2d = target.reshape(B, 1).astype(jnp.int32)
    phi_tgt = jnp.take_along_axis(phi_theta, tgt2d, axis=1)               # [B, 1]

    # Pad classes with a large negative (never wins the max, exp underflows to 0);
    # pad batch rows with zeros (masked out in-kernel).
    cos_p = jnp.pad(cos_theta, ((0, 0), (0, C_pad - C)), constant_values=_NEG_BIG)
    cos_p = jnp.pad(cos_p, ((0, B_pad - B), (0, 0)))
    phi_tgt = jnp.pad(phi_tgt, ((0, B_pad - B), (0, 0)))
    tgt2d = jnp.pad(tgt2d, ((0, B_pad - B), (0, 0)))

    kernel = functools.partial(_asoftmax_loss_kernel, scale=scale, gamma=gamma,
                               b_true=B, tb=tb)

    partials = pl.pallas_call(
        kernel,
        grid=(grid,),
        out_shape=jax.ShapeDtypeStruct((grid, 1), jnp.float32),
        in_specs=[
            pl.BlockSpec((tb, 1), lambda i: (i, 0)),        # target ids   [TB, 1]
            pl.BlockSpec((tb, C_pad), lambda i: (i, 0)),    # cos_theta    [TB, Cpad]
            pl.BlockSpec((tb, 1), lambda i: (i, 0)),        # phi@target   [TB, 1]
        ],
        out_specs=pl.BlockSpec((1, 1), lambda i: (i, 0), memory_space=pltpu.SMEM),
        compiler_params=pltpu.CompilerParams(
            dimension_semantics=("parallel",)),
    )(tgt2d, cos_p, phi_tgt)

    return jnp.sum(partials) / B


def _reference(cos_theta, phi_theta, target, *, gamma=0, it=1,
               lambda_min=5.0, lambda_max=1500.0):
    lamb = max(lambda_min, lambda_max / (1.0 + 0.1 * it))
    _, C = cos_theta.shape
    onehot = jax.nn.one_hot(target, C, dtype=bool)
    scale = 1.0 / (1.0 + lamb)
    output = jnp.where(onehot,
                       cos_theta - cos_theta * scale + phi_theta * scale,
                       cos_theta)
    log_sm = jax.nn.log_softmax(output, axis=1)
    logit = jnp.sum(jnp.where(onehot, log_sm, 0.0), axis=1)
    pt = jnp.exp(logit)
    return jnp.mean(-((1.0 - pt) ** gamma) * logit)


if __name__ == "__main__":
    key = jax.random.PRNGKey(0)
    B, C = 10, 20   # deliberately not (8,128)-aligned: exercises pad + mask paths

    k_cos, k_phi, k_tgt = jax.random.split(key, 3)
    # cos_theta in [-1, 1]; phi_theta is the margin-modified logit (<= cos_theta)
    cos_theta = jax.random.uniform(k_cos, (B, C), jnp.float32, minval=-1.0, maxval=1.0)
    phi_theta = cos_theta - jax.random.uniform(k_phi, (B, C), jnp.float32,
                                               minval=0.0, maxval=0.5)
    target = jax.random.randint(k_tgt, (B,), 0, C, dtype=jnp.int32)

    loss = angular_softmax_with_loss(cos_theta, phi_theta, target, gamma=0, it=1)
    jax.block_until_ready(loss)
    ref = _reference(cos_theta, phi_theta, target, gamma=0, it=1)
    assert jnp.allclose(loss, ref, atol=1e-5, rtol=1e-5), (loss, ref)

    # Focal-style modulation path (integer-gamma multiply chain).
    loss2 = angular_softmax_with_loss(cos_theta, phi_theta, target, gamma=2, it=1)
    jax.block_until_ready(loss2)
    ref2 = _reference(cos_theta, phi_theta, target, gamma=2, it=1)
    assert jnp.allclose(loss2, ref2, atol=1e-5, rtol=1e-5), (loss2, ref2)

    print("KERNEL_OK")
</pallas_src>

<mosaic_0001>
module attributes {stable_mosaic.version = 11 : i64} {
  func.func @_asoftmax_loss_kernel(%arg0: i32, %arg1: memref<16x1xi32, #tpu.memory_space<vmem>>, %arg2: memref<16x128xf32, #tpu.memory_space<vmem>>, %arg3: memref<16x1xf32, #tpu.memory_space<vmem>>, %arg4: memref<1x1xf32, #tpu.memory_space<smem>>) attributes {dimension_semantics = [#tpu.dimension_semantics<parallel>], iteration_bounds = array<i64: 1>, scalar_prefetch = 0 : i64, scratch_operands = 0 : i64, tpu.core_type = #tpu.core_type<tc>, window_params = [{transform_indices = @transform_0, window_bounds = array<i64: 16, 1>}, {transform_indices = @transform_1, window_bounds = array<i64: 16, 128>}, {transform_indices = @transform_2, window_bounds = array<i64: 16, 1>}, {transform_indices = @transform_3, window_bounds = array<i64: 1, 1>}]} {
    %c0 = arith.constant 0 : index
    %c0_0 = arith.constant 0 : index
    %0 = vector.load %arg2[%c0, %c0_0] : memref<16x128xf32, #tpu.memory_space<vmem>>, vector<16x128xf32>
    %c0_1 = arith.constant 0 : index
    %c0_2 = arith.constant 0 : index
    %1 = vector.load %arg1[%c0_1, %c0_2] : memref<16x1xi32, #tpu.memory_space<vmem>>, vector<16x1xi32>
    %c0_3 = arith.constant 0 : index
    %c0_4 = arith.constant 0 : index
    %2 = vector.load %arg3[%c0_3, %c0_4] : memref<16x1xf32, #tpu.memory_space<vmem>>, vector<16x1xf32>
    %3 = tpu.iota {dimensions = array<i32: 1>} : vector<16x128xi32>
    %4 = vector.broadcast %1 : vector<16x1xi32> to vector<16x128xi32>
    %5 = arith.cmpi eq, %3, %4 : vector<16x128xi32>
    %cst = arith.constant 0.000000e+00 : f32
    %6 = vector.broadcast %cst : f32 to vector<16x128xf32>
    %7 = arith.select %5, %0, %6 : vector<16x128xi1>, vector<16x128xf32>
    %cst_5 = arith.constant dense<0.000000e+00> : vector<16xf32>
    %8 = vector.multi_reduction <add>, %7, %cst_5 [1] : vector<16x128xf32> to vector<16xf32>
    %9 = vector.shape_cast %8 : vector<16xf32> to vector<16x1xf32>
    %cst_6 = arith.constant 7.327960e-04 : f32
    %10 = vector.broadcast %cst_6 : f32 to vector<16x1xf32>
    %11 = arith.mulf %9, %10 : vector<16x1xf32>
    %12 = arith.subf %9, %11 : vector<16x1xf32>
    %cst_7 = arith.constant 7.327960e-04 : f32
    %13 = vector.broadcast %cst_7 : f32 to vector<16x1xf32>
    %14 = arith.mulf %2, %13 : vector<16x1xf32>
    %15 = arith.addf %12, %14 : vector<16x1xf32>
    %16 = vector.shape_cast %15 : vector<16x1xf32> to vector<16x1xf32>
    %17 = vector.broadcast %16 : vector<16x1xf32> to vector<16x128xf32>
    %18 = arith.select %5, %17, %0 : vector<16x128xi1>, vector<16x128xf32>
    %cst_8 = arith.constant dense<0xFF800000> : vector<16xf32>
    %19 = vector.multi_reduction <maximumf>, %18, %cst_8 [1] : vector<16x128xf32> to vector<16xf32>
    %20 = vector.shape_cast %19 : vector<16xf32> to vector<16x1xf32>
    %21 = vector.broadcast %20 : vector<16x1xf32> to vector<16x128xf32>
    %22 = arith.subf %18, %21 : vector<16x128xf32>
    %23 = math.exp %22 : vector<16x128xf32>
    %cst_9 = arith.constant dense<0.000000e+00> : vector<16xf32>
    %24 = vector.multi_reduction <add>, %23, %cst_9 [1] : vector<16x128xf32> to vector<16xf32>
    %25 = vector.shape_cast %24 : vector<16xf32> to vector<16x1xf32>
    %26 = math.log %25 : vector<16x1xf32>
    %27 = arith.subf %15, %20 : vector<16x1xf32>
    %28 = arith.subf %27, %26 : vector<16x1xf32>
    %cst_10 = arith.constant 0.000000e+00 : f32
    %29 = vector.broadcast %cst_10 : f32 to vector<16x1xf32>
    %30 = arith.subf %29, %28 : vector<16x1xf32>
    %c16_i32 = arith.constant 16 : i32
    %31 = arith.muli %arg0, %c16_i32 : i32
    %32 = tpu.iota {dimensions = array<i32: 0>} : vector<16x1xi32>
    %33 = vector.broadcast %31 : i32 to vector<16x1xi32>
    %34 = arith.addi %33, %32 : vector<16x1xi32>
    %c10_i32 = arith.constant 10 : i32
    %35 = vector.broadcast %c10_i32 : i32 to vector<16x1xi32>
    %36 = arith.cmpi slt, %34, %35 : vector<16x1xi32>
    %cst_11 = arith.constant 0.000000e+00 : f32
    %37 = vector.broadcast %cst_11 : f32 to vector<16x1xf32>
    %38 = arith.select %36, %30, %37 : vector<16x1xi1>, vector<16x1xf32>
    %39 = vector.shape_cast %38 : vector<16x1xf32> to vector<1x16x1xf32>
    %cst_12 = arith.constant dense<0.000000e+00> : vector<1xf32>
    %40 = vector.multi_reduction <add>, %39, %cst_12 [1, 2] : vector<1x16x1xf32> to vector<1xf32>
    %41 = vector.shape_cast %40 : vector<1xf32> to vector<1x1x1xf32>
    %42 = vector.extract %41[0, 0, 0] : f32 from vector<1x1x1xf32>
    %c0_13 = arith.constant 0 : index
    %c0_14 = arith.constant 0 : index
    %43 = memref.load %arg4[%c0_13, %c0_14] : memref<1x1xf32, #tpu.memory_space<smem>>
    memref.store %42, %arg4[%c0_13, %c0_14] : memref<1x1xf32, #tpu.memory_space<smem>>
    return
  }
  func.func @transform_0(%arg0: i32) -> (i32, i32) {
    %c0_i32 = arith.constant 0 : i32
    %c0_i32_0 = arith.constant 0 : i32
    return %arg0, %c0_i32 : i32, i32
  }
  func.func @transform_1(%arg0: i32) -> (i32, i32) {
    %c0_i32 = arith.constant 0 : i32
    %c0_i32_0 = arith.constant 0 : i32
    return %arg0, %c0_i32 : i32, i32
  }
  func.func @transform_2(%arg0: i32) -> (i32, i32) {
    %c0_i32 = arith.constant 0 : i32
    %c0_i32_0 = arith.constant 0 : i32
    return %arg0, %c0_i32 : i32, i32
  }
  func.func @transform_3(%arg0: i32) -> (i32, i32) {
    %c0_i32 = arith.constant 0 : i32
    %c0_i32_0 = arith.constant 0 : i32
    return %arg0, %c0_i32 : i32, i32
  }
}

</mosaic_0001>

<llo_original>
// kernel: tpu_custom_call.1
$region0: #{tpu_custom_call.1}
  #allocation0 [shape = 'u32[]', space=smem, size = 0x4, offset = 0x4, fixed_abs, tag = 'smem constant byte address 0x4 - core index']
  #allocation1 [shape = 'u32[144,128]{1,0:T(1,128)}', space=vmem, size = 0x12000, scoped, tag = 'internal scratch']
  %s0 = inlined_call_operand.vmem [shape: s32[16,1], index: 0, kind: input, shape index: {}]
  %s1 = inlined_call_operand.vmem [shape: f32[16,128], index: 1, kind: input, shape index: {}]
  %s2 = inlined_call_operand.vmem [shape: f32[16,1], index: 2, kind: input, shape index: {}]
  %s3 = inlined_call_operand.hbm [shape: f32[1,1], index: 3, kind: output, shape index: {}]
  %s4 = sld [smem:[#allocation0]]
  $region22: #{tpu_custom_call.1} parent=0
    _
  %s6 = ssub.s32 1, %s4
  %s7 = scalar_select 0, %s6, %s4
  $region1: #{tpu_custom_call.1} parent=0
    #allocation2 [shape = 'u8[512]{0}', space=smem, size = 0x200, scoped, tag = 'output window, operand 0, single buffered']
    #allocation3 [shape = 's32[1]{0}', space=sflag, size = 0x4, scoped, tag = 'scoped memory for tpu_custom_call.1']
    %8 = vsyncpa [#allocation3], 0
    // Predicated region
    $region2: #{tpu_custom_call.1} parent=1 // pred_check
      _
    $region3: #{tpu_custom_call.1} parent=1 // pred_check_branch
      %10 = sbr.rel (0) target = $region5
    $region4: #{tpu_custom_call.1} parent=1 // pred_region
      _
    $region5: #{tpu_custom_call.1} parent=1 // pred_fallthru
      _
    // Predicated region
    $region6: #{tpu_custom_call.1} parent=1 // pred_check
      _
    $region7: #{tpu_custom_call.1} parent=1 // pred_check_branch
      %12 = sbr.rel (0) target = $region9
    $region8: #{tpu_custom_call.1} parent=1 // pred_region
      _
    $region9: #{tpu_custom_call.1} parent=1 // pred_fallthru
      _
    // Predicated region
    $region10: #{tpu_custom_call.1} parent=1 // pred_check
      _
    $region11: #{tpu_custom_call.1} parent=1 // pred_check_branch
      %14 = sbr.rel (0) target = $region13
    $region12: #{tpu_custom_call.1} parent=1 // pred_region
      _
    $region13: #{tpu_custom_call.1} parent=1 // pred_fallthru
      _
    %v15 = vld [vmem:[%s1] sm:$0xff]
    %v16 = vld [vmem:[%s1 + $0x8] sm:$0xff]
    %v17 = vld [vmem:[%s0] sm:$0xff]
    %v18 = vld [vmem:[%s0 + $0x8] sm:$0xff]
    %v19 = vld [vmem:[%s2] sm:$0xff]
    %v20 = vld [vmem:[%s2 + $0x8] sm:$0xff]
    %v21 = vlaneseq
    %v22 = vand.u32 %v21, 127
    %23 = vset.pattern.permute.xlu0 0
    %24 = vperm.xlu0 %23, %v17
    %v25 = vpop.permute.xlu0 %24
    %26 = vset.pattern.permute.xlu0 0
    %27 = vperm.xlu0 %26, %v18
    %v28 = vpop.permute.xlu0 %27
    %vm29 = vcmp.eq.s32.totalorder %v22, %v25
    %vm30 = vcmp.eq.s32.totalorder %v22, %v28
    %v31 = vsel %vm29, %v15, 0.0
    %v32 = vsel %vm30, %v16, 0.0
    %33 = vadd.xlane.f32.xlu0 %v31
    %v34 = vpop.xlane.xlu0 %33
    %35 = vadd.xlane.f32.xlu0 %v32
    %v36 = vpop.xlane.xlu0 %35
    %v37 = vmul.f32 %v34, 0.000732796
    %v38 = vmul.f32 %v36, 0.000732796
    %v39 = vsub.f32 %v34, %v37
    %v40 = vsub.f32 %v36, %v38
    %v41 = vmul.f32 %v19, 0.000732796
    %v42 = vmul.f32 %v20, 0.000732796
    %v43 = vadd.f32 %v39, %v41
    %v44 = vadd.f32 %v40, %v42
    %46 = vset.pattern.permute.xlu0 0
    %47 = vperm.xlu0 %46, %v43
    %v48 = vpop.permute.xlu0 %47
    %51 = vset.pattern.permute.xlu0 0
    %52 = vperm.xlu0 %51, %v44
    %v53 = vpop.permute.xlu0 %52
    %v55 = vsel %vm29, %v48, %v15
    %v56 = vsel %vm30, %v53, %v16
    %57 = vmax.xlane.f32.xlu0 %v55
    %v58 = vpop.xlane.xlu0 %57
    %59 = vmax.xlane.f32.xlu0 %v56
    %v60 = vpop.xlane.xlu0 %59
    %v61 = vsub.f32 %v55, %v58
    %v62 = vsub.f32 %v56, %v60
    %v63 = vmul.f32 %v61, 1.442695
    %v64 = vpow.pop %v63
    %v65 = vmul.f32 %v62, 1.442695
    %v66 = vpow.pop %v65
    %67 = vadd.xlane.f32.xlu0 %v64
    %v68 = vpop.xlane.xlu0 %67
    %69 = vadd.xlane.f32.xlu0 %v66
    %v70 = vpop.xlane.xlu0 %69
    %v71 = vlog2.pop %v68
    %v72 = vmul.f32 %v71, 0.6931472
    %v73 = vlog2.pop %v70
    %v74 = vmul.f32 %v73, 0.6931472
    %v75 = vsub.f32 %v43, %v58
    %v76 = vsub.f32 %v44, %v60
    %v77 = vsub.f32 %v75, %v72
    %v78 = vsub.f32 %v76, %v74
    %v79 = vsub.f32 0.0, %v77
    %v80 = vsub.f32 0.0, %v78
    %s81 = smul.u32 0, 16
    %v82 = vlaneseq
    %v83 = vshrl.u32 %v82, 7
    %v84 = vadd.s32 %v83, 8
    %v85 = vstv %s81
    %v86 = vadd.s32 %v85, %v83
    %v87 = vadd.s32 %v85, %v84
    %vm88 = vcmp.lt.s32.totalorder %v86, 10
    %vm89 = vcmp.lt.s32.totalorder %v87, 10
    %v90 = vsel %vm88, %v79, 0.0
    %v91 = vsel %vm89, %v80, 0.0
    %vm92 = vcmask 7168
    %v93 = vsel %vm92, %v90, 0.0
    %v94 = vsel %vm92, %v91, 0.0
    %v95 = vadd.f32 %v93, %v94
    %96 = vadd.xlane.f32.xlu0 %v95
    %v97 = vpop.xlane.xlu0 %96
    %v98 = vrot.slane %v97, 4
    %v99 = vadd.f32 %v97, %v98
    %v100 = vrot.slane %v99, 2
    %v101 = vadd.f32 %v99, %v100
    %v102 = vrot.slane %v101, 1
    %v103 = vadd.f32 %v101, %v102
    %s104 = vtos %v103
    %s105 = scalar_lea.smem [#allocation2], 0
    %106 = sst [smem:[%s105]] %s104
    // Predicated region
    $region14: #{tpu_custom_call.1} parent=1 // pred_check
      _
    $region15: #{tpu_custom_call.1} parent=1 // pred_check_branch
      %108 = sbr.rel (0) target = $region17
    $region16: #{tpu_custom_call.1} parent=1 // pred_region
      %s110 = ssub.s32 16, 16
      %111 = vsyncadd [#allocation3], %s110
      %114 = dma.smem_to_hbm [#allocation2], 16, %s3, [#allocation3]
    $region17: #{tpu_custom_call.1} parent=1 // pred_fallthru
      _
    // Predicated region
    $region18: #{tpu_custom_call.1} parent=1 // pred_check
      _
    $region19: #{tpu_custom_call.1} parent=1 // pred_check_branch
      %116 = sbr.rel (0) target = $region21
    $region20: #{tpu_custom_call.1} parent=1 // pred_region
      %117 = dma.done [#allocation3], 16
    $region21: #{tpu_custom_call.1} parent=1 // pred_fallthru
      _
    %118 = sfence
    %119 = vsyncpa [#allocation3], 1

</llo_original>
